<compile_context>
chip_gen: v5e
topology: v5e:2x2
jax: 0.10.0
libtpu: 0.0.40
codegen_flags: <defaults>
</compile_context>

<pallas_src>
import functools

import jax
import jax.numpy as jnp
from jax import lax
from jax.experimental import pallas as pl
from jax.experimental.pallas import tpu as pltpu


# ---------------------------------------------------------------------------
# Kernels
# ---------------------------------------------------------------------------
def _layer_loop(prop_fn, x0, scale_ref, out_ref, num_layers):
    """Shared layer loop: residual + dropout-scale + running mean."""

    def body(layer_idx, carry):
        x, acc = carry
        prop = prop_fn(x)                       # f32 (P_tile, TILE_D)
        x = (prop + x) * scale_ref[layer_idx]   # residual + inverted dropout
        acc = acc + x
        return (x, acc)

    # Unroll only when the layer count is small; otherwise keep live ranges
    # bounded (64 vregs) with a real loop.
    _, acc = lax.fori_loop(0, num_layers, body, (x0, x0),
                           unroll=(num_layers <= 4))
    out_ref[...] = (acc * (1.0 / float(num_layers + 1))).astype(out_ref.dtype)


def _hconv_kernel_pair(hg_up_ref, hg_pu_ref, pois_ref, scale_ref, out_ref,
                       *, num_layers):
    """Two-matmul propagation (HG_up / HG_pu kept separate).

    hg_up_ref: (U, P) bf16   hg_pu_ref: (P, U) bf16
    pois_ref : (P, TILE_D) f32   scale_ref: (L, P, TILE_D) f32
    out_ref  : (P, TILE_D) f32
    """
    hg_up = hg_up_ref[...]          # bf16, loaded once, reused every layer
    hg_pu = hg_pu_ref[...]

    def prop_fn(x):
        msg = jnp.dot(hg_up, x.astype(jnp.bfloat16),
                      preferred_element_type=jnp.float32)
        return jnp.dot(hg_pu, msg.astype(jnp.bfloat16),
                       preferred_element_type=jnp.float32)

    _layer_loop(prop_fn, pois_ref[...].astype(jnp.float32),
                scale_ref, out_ref, num_layers)


def _hconv_kernel_fused(hg_ref, pois_ref, scale_ref, out_ref, *, num_layers):
    """Fused propagation with A = HG_pu @ HG_up precomputed on host.

    hg_ref   : (P, P) bf16
    pois_ref : (P, TILE_D) f32   scale_ref: (L, P, TILE_D) f32
    out_ref  : (P, TILE_D) f32
    """
    hg = hg_ref[...]

    def prop_fn(x):
        return jnp.dot(hg, x.astype(jnp.bfloat16),
                       preferred_element_type=jnp.float32)

    _layer_loop(prop_fn, pois_ref[...].astype(jnp.float32),
                scale_ref, out_ref, num_layers)


# ---------------------------------------------------------------------------
# Host-side helpers
# ---------------------------------------------------------------------------
def _make_dropout_scale(num_layers, P, D, dropout_p, rng_key):
    """Inverted-dropout scale masks: 0 or 1/keep_prob, one per layer."""
    if dropout_p <= 0.0:
        return jnp.ones((num_layers, P, D), jnp.float32)
    if dropout_p >= 1.0:
        return jnp.zeros((num_layers, P, D), jnp.float32)
    if rng_key is None:
        rng_key = jax.random.PRNGKey(0)
    keep_prob = 1.0 - float(dropout_p)
    keep = jax.random.bernoulli(rng_key, p=keep_prob, shape=(num_layers, P, D))
    return keep.astype(jnp.float32) * (1.0 / keep_prob)


def _pick_tile_d(D):
    """Lane-dense D tile: 256 fills the 2x256 MXU N-side on v6e/v7x."""
    if D % 256 == 0:
        return 256
    if D % 128 == 0:
        return 128
    return D   # small / ragged D: single full-width tile


# ---------------------------------------------------------------------------
# Wrapper (equivalent of MultiViewHyperConvNetwork.forward)
# ---------------------------------------------------------------------------
def multi_view_hyper_conv_network(pois_embs, pad_all_train_sessions,
                                  HG_up, HG_pu, *, num_layers, dropout_p,
                                  rng_key=None, fuse_incidence=None):
    """JAX/Pallas equivalent of MultiViewHyperConvNetwork.forward.

    pois_embs: (P, D) float32
    HG_up    : (U, P) float32 (dense stand-in for torch.sparse)
    HG_pu    : (P, U) float32
    pad_all_train_sessions: unused (kept for signature parity).
    """
    del pad_all_train_sessions  # unused in the reference forward pass
    P, D = pois_embs.shape
    U, P2 = HG_up.shape
    assert P2 == P and HG_pu.shape == (P, U)

    # Host-side dropout masks (F.dropout default: training=True).
    scale = _make_dropout_scale(num_layers, P, D, float(dropout_p), rng_key)

    # When P <= 2*U the fused (P,P) propagation matrix is both fewer flops and
    # a far better MXU fill than two matmuls with a U-sized dim.
    if fuse_incidence is None:
        fuse_incidence = P <= 2 * U

    TILE_D = _pick_tile_d(D)
    grid = (D // TILE_D,)

    x_spec = pl.BlockSpec((P, TILE_D), lambda d: (0, d))
    s_spec = pl.BlockSpec((num_layers, P, TILE_D), lambda d: (0, 0, d))
    out_spec = pl.BlockSpec((P, TILE_D), lambda d: (0, d))

    if fuse_incidence:
        # A = HG_pu @ HG_up in f32 once on host, then bf16 for the MXU.
        A = jnp.dot(HG_pu.astype(jnp.float32), HG_up.astype(jnp.float32),
                    preferred_element_type=jnp.float32).astype(jnp.bfloat16)
        kernel = functools.partial(_hconv_kernel_fused, num_layers=num_layers)
        hg_specs = [pl.BlockSpec((P, P), lambda d: (0, 0))]
        hg_args = (A,)
        hg_bytes = P * P * 2
    else:
        kernel = functools.partial(_hconv_kernel_pair, num_layers=num_layers)
        hg_specs = [pl.BlockSpec((U, P), lambda d: (0, 0)),
                    pl.BlockSpec((P, U), lambda d: (0, 0))]
        hg_args = (HG_up.astype(jnp.bfloat16), HG_pu.astype(jnp.bfloat16))
        hg_bytes = 2 * U * P * 2
    # TODO(synk): for P,U where HG cannot fit VMEM even in bf16, stream
    # (TILE_U, TILE_P) blocks of HG from HBM with pltpu.emit_pipeline.

    # Explicit scoped-VMEM budget (default is only 16 MiB on v5e).
    tile_bytes = P * TILE_D * 4
    needed = (2 * hg_bytes                                    # HG (2 bufs)
              + 2 * (2 * tile_bytes + num_layers * tile_bytes)  # pois/out/scale
              + 4 * tile_bytes + U * TILE_D * 4)              # x/acc/msg temps
    vmem_limit = int(min(max(2 * needed, 32 * 1024 * 1024), 64 * 1024 * 1024))

    grid_spec = pltpu.PrefetchScalarGridSpec(
        num_scalar_prefetch=0,
        grid=grid,
        in_specs=[*hg_specs, x_spec, s_spec],
        out_specs=out_spec,
    )

    return pl.pallas_call(
        kernel,
        out_shape=jax.ShapeDtypeStruct((P, D), jnp.float32),
        grid_spec=grid_spec,
        compiler_params=pltpu.CompilerParams(
            dimension_semantics=("parallel",),   # D-slabs are independent
            vmem_limit_bytes=vmem_limit),
    )(*hg_args, pois_embs.astype(jnp.float32), scale)


# ---------------------------------------------------------------------------
# Pure-JAX reference (mirrors the kernel's bf16-matmul / f32-accumulate math)
# ---------------------------------------------------------------------------
def _reference(pois_embs, HG_up, HG_pu, scale, num_layers, fuse_incidence):
    x = pois_embs.astype(jnp.float32)
    acc = x
    if fuse_incidence:
        A = jnp.dot(HG_pu.astype(jnp.float32), HG_up.astype(jnp.float32),
                    preferred_element_type=jnp.float32).astype(jnp.bfloat16)
    for layer_idx in range(num_layers):
        if fuse_incidence:
            prop = jnp.dot(A, x.astype(jnp.bfloat16),
                           preferred_element_type=jnp.float32)
        else:
            msg = jnp.dot(HG_up.astype(jnp.bfloat16), x.astype(jnp.bfloat16),
                          preferred_element_type=jnp.float32)
            prop = jnp.dot(HG_pu.astype(jnp.bfloat16), msg.astype(jnp.bfloat16),
                           preferred_element_type=jnp.float32)
        x = (prop + x) * scale[layer_idx]
        acc = acc + x
    return acc * (1.0 / float(num_layers + 1))


if __name__ == "__main__":
    # Small shapes consistent with the module:
    #   P = num POIs, U = num users/hyperedges, D = emb_dim
    P, U, D = 128, 64, 128
    NUM_LAYERS = 2
    DROPOUT = 0.3

    key = jax.random.PRNGKey(0)
    k1, k2, k3, k4, k5 = jax.random.split(key, 5)
    pois_embs = jax.random.normal(k1, (P, D), dtype=jnp.float32)
    # Dense stand-ins for the sparse incidence matrices HG_up / HG_pu.
    HG_up = (jax.random.uniform(k2, (U, P)) < 0.1).astype(jnp.float32) * 0.25
    HG_pu = (jax.random.uniform(k3, (P, U)) < 0.1).astype(jnp.float32) * 0.25
    # Unused by the forward pass, but part of the signature.
    pad_all_train_sessions = jax.random.randint(k4, (16, 8), 0, P)

    # Main run: dropout active (training mode, as in the PyTorch forward).
    out = multi_view_hyper_conv_network(
        pois_embs, pad_all_train_sessions, HG_up, HG_pu,
        num_layers=NUM_LAYERS, dropout_p=DROPOUT, rng_key=k5)
    out = jax.block_until_ready(out)
    assert out.shape == (P, D) and out.dtype == jnp.float32

    # Check against a pure-JAX reference using the SAME host-generated dropout
    # masks (fused path: P <= 2U here).
    scale = _make_dropout_scale(NUM_LAYERS, P, D, DROPOUT, k5)
    fuse = P <= 2 * U
    ref = _reference(pois_embs, HG_up, HG_pu, scale, NUM_LAYERS, fuse)
    assert jnp.allclose(out, ref, atol=5e-3, rtol=5e-3)

    # Also exercise the two-matmul (unfused) kernel with dropout off.
    out2 = multi_view_hyper_conv_network(
        pois_embs, pad_all_train_sessions, HG_up, HG_pu,
        num_layers=NUM_LAYERS, dropout_p=0.0, fuse_incidence=False)
    out2 = jax.block_until_ready(out2)
    scale_ones = jnp.ones((NUM_LAYERS, P, D), jnp.float32)
    ref2 = _reference(pois_embs, HG_up, HG_pu, scale_ones, NUM_LAYERS, False)
    assert jnp.allclose(out2, ref2, atol=5e-3, rtol=5e-3)

    print("KERNEL_OK")
</pallas_src>

<mosaic_0001>
module attributes {stable_mosaic.version = 11 : i64} {
  func.func @_hconv_kernel_fused(%arg0: i32, %arg1: memref<128x128xbf16, #tpu.memory_space<vmem>>, %arg2: memref<128x128xf32, #tpu.memory_space<vmem>>, %arg3: memref<2x128x128xf32, #tpu.memory_space<vmem>>, %arg4: memref<128x128xf32, #tpu.memory_space<vmem>>) attributes {dimension_semantics = [#tpu.dimension_semantics<parallel>], iteration_bounds = array<i64: 1>, scalar_prefetch = 0 : i64, scratch_operands = 0 : i64, tpu.core_type = #tpu.core_type<tc>, window_params = [{pipeline_mode = #tpu.pipeline_mode<synchronous>, transform_indices = @transform_0, window_bounds = array<i64: 128, 128>}, {transform_indices = @transform_1, window_bounds = array<i64: 128, 128>}, {transform_indices = @transform_2, window_bounds = array<i64: 2, 128, 128>}, {transform_indices = @transform_3, window_bounds = array<i64: 128, 128>}]} {
    %c0 = arith.constant 0 : index
    %c0_0 = arith.constant 0 : index
    %0 = vector.load %arg1[%c0, %c0_0] : memref<128x128xbf16, #tpu.memory_space<vmem>>, vector<128x128xbf16>
    %c0_1 = arith.constant 0 : index
    %c0_2 = arith.constant 0 : index
    %1 = vector.load %arg2[%c0_1, %c0_2] : memref<128x128xf32, #tpu.memory_space<vmem>>, vector<128x128xf32>
    %c0_i32 = arith.constant 0 : i32
    %2 = arith.truncf %1 : vector<128x128xf32> to vector<128x128xbf16>
    %cst = arith.constant dense<0.000000e+00> : vector<128x128xf32>
    %3 = tpu.matmul %0, %2, %cst {dimension_numbers = #tpu.dot_dimension_numbers<[1], [0], [0], [1], [0, 0, 1, 1], [], []>} : vector<128x128xbf16>, vector<128x128xbf16>, vector<128x128xf32> -> vector<128x128xf32>
    %4 = arith.addf %3, %1 : vector<128x128xf32>
    %5 = arith.index_cast %c0_i32 : i32 to index
    %c0_3 = arith.constant 0 : index
    %c0_4 = arith.constant 0 : index
    %6 = vector.load %arg3[%5, %c0_3, %c0_4] : memref<2x128x128xf32, #tpu.memory_space<vmem>>, vector<1x128x128xf32>
    %7 = vector.shape_cast %6 : vector<1x128x128xf32> to vector<128x128xf32>
    %8 = arith.mulf %4, %7 : vector<128x128xf32>
    %9 = arith.addf %1, %8 : vector<128x128xf32>
    %c1_i32 = arith.constant 1 : i32
    %10 = arith.truncf %8 : vector<128x128xf32> to vector<128x128xbf16>
    %cst_5 = arith.constant dense<0.000000e+00> : vector<128x128xf32>
    %11 = tpu.matmul %0, %10, %cst_5 {dimension_numbers = #tpu.dot_dimension_numbers<[1], [0], [0], [1], [0, 0, 1, 1], [], []>} : vector<128x128xbf16>, vector<128x128xbf16>, vector<128x128xf32> -> vector<128x128xf32>
    %12 = arith.addf %11, %8 : vector<128x128xf32>
    %13 = arith.index_cast %c1_i32 : i32 to index
    %c0_6 = arith.constant 0 : index
    %c0_7 = arith.constant 0 : index
    %14 = vector.load %arg3[%13, %c0_6, %c0_7] : memref<2x128x128xf32, #tpu.memory_space<vmem>>, vector<1x128x128xf32>
    %15 = vector.shape_cast %14 : vector<1x128x128xf32> to vector<128x128xf32>
    %16 = arith.mulf %12, %15 : vector<128x128xf32>
    %17 = arith.addf %9, %16 : vector<128x128xf32>
    %c2_i32 = arith.constant 2 : i32
    %cst_8 = arith.constant 0.333333343 : f32
    %18 = vector.broadcast %cst_8 : f32 to vector<128x128xf32>
    %19 = arith.mulf %17, %18 : vector<128x128xf32>
    %c0_9 = arith.constant 0 : index
    %c0_10 = arith.constant 0 : index
    %20 = vector.load %arg4[%c0_9, %c0_10] : memref<128x128xf32, #tpu.memory_space<vmem>>, vector<128x128xf32>
    tpu.vector_store %arg4[%c0_9, %c0_10], %19 {strides = array<i32>} : memref<128x128xf32, #tpu.memory_space<vmem>>, vector<128x128xf32>,
    return
  }
  func.func @transform_0(%arg0: i32) -> (i32, i32) {
    %c0_i32 = arith.constant 0 : i32
    %c0_i32_0 = arith.constant 0 : i32
    %c0_i32_1 = arith.constant 0 : i32
    return %c0_i32, %c0_i32_0 : i32, i32
  }
  func.func @transform_1(%arg0: i32) -> (i32, i32) {
    %c0_i32 = arith.constant 0 : i32
    %c0_i32_0 = arith.constant 0 : i32
    return %c0_i32, %arg0 : i32, i32
  }
  func.func @transform_2(%arg0: i32) -> (i32, i32, i32) {
    %c0_i32 = arith.constant 0 : i32
    %c0_i32_0 = arith.constant 0 : i32
    %c0_i32_1 = arith.constant 0 : i32
    return %c0_i32, %c0_i32_0, %arg0 : i32, i32, i32
  }
  func.func @transform_3(%arg0: i32) -> (i32, i32) {
    %c0_i32 = arith.constant 0 : i32
    %c0_i32_0 = arith.constant 0 : i32
    return %c0_i32, %arg0 : i32, i32
  }
}

</mosaic_0001>

<llo_original>
// kernel: tpu_custom_call.1
$region0: #{tpu_custom_call.1}
  #allocation0 [shape = 'u32[]', space=smem, size = 0x4, offset = 0x4, fixed_abs, tag = 'smem constant byte address 0x4 - core index']
  #allocation1 [shape = 'u32[72,128]{1,0:T(1,128)}', space=vmem, size = 0x9000, scoped, tag = 'internal scratch']
  %s0 = inlined_call_operand.hbm [shape: bf16[128,128], index: 0, kind: input, shape index: {}]
  %s1 = inlined_call_operand.hbm [shape: f32[128,128], index: 1, kind: input, shape index: {}]
  %s2 = inlined_call_operand.hbm [shape: f32[2,128,128], index: 2, kind: input, shape index: {}]
  %s3 = inlined_call_operand.hbm [shape: f32[128,128], index: 3, kind: output, shape index: {}]
  %s4 = sld [smem:[#allocation0]]
  $region34: #{tpu_custom_call.1} parent=0
    _
  %s6 = ssub.s32 1, %s4
  %s7 = scalar_select 0, %s6, %s4
  $region1: #{tpu_custom_call.1} parent=0
    #allocation2 [shape = 'u8[32768]{0}', space=vmem, size = 0x8000, scoped, tag = 'input window, operand 0, single buffered']
    #allocation3 [shape = 's32[1]{0}', space=sflag, size = 0x4, scoped, tag = 'scoped memory for tpu_custom_call.1']
    #allocation4 [shape = 's32[1]{0}', space=sflag, size = 0x4, scoped, tag = 'scoped memory for tpu_custom_call.1']
    #allocation5 [shape = 'u8[65536]{0}', space=vmem, size = 0x10000, scoped, tag = 'input window, operand 1, single buffered']
    #allocation6 [shape = 's32[1]{0}', space=sflag, size = 0x4, scoped, tag = 'scoped memory for tpu_custom_call.1']
    #allocation7 [shape = 'u8[131072]{0}', space=vmem, size = 0x20000, scoped, tag = 'input window, operand 2, single buffered']
    #allocation8 [shape = 'u8[65536]{0}', space=vmem, size = 0x10000, scoped, tag = 'output window, operand 0, single buffered']
    %8 = vsyncpa [#allocation3], 0
    %9 = vsyncpa [#allocation6], 0
    %10 = vsyncpa [#allocation4], 0
    // Predicated region
    $region2: #{tpu_custom_call.1} parent=1 // pred_check
      _
    $region3: #{tpu_custom_call.1} parent=1 // pred_check_branch
      %12 = sbr.rel (0) target = $region5
    $region4: #{tpu_custom_call.1} parent=1 // pred_region
      %14 = vsyncadd [#allocation3], 0
      %s15 = sshll.u32 %s0, 4
      %s16 = int_to_ptr.hbm [resolvable:$true] %s15
      %s17 = sshll.u32 [#allocation2], 4
      %s18 = int_to_ptr.vmem [resolvable:$true] %s17
      %23 = dma.hbm_to_vmem [thread:$0]  %s16, 1024, %s18, [#allocation3], 64, 64, 4
    $region5: #{tpu_custom_call.1} parent=1 // pred_fallthru
      _
    // Predicated region
    $region6: #{tpu_custom_call.1} parent=1 // pred_check
      _
    $region7: #{tpu_custom_call.1} parent=1 // pred_check_branch
      %25 = sbr.rel (0) target = $region9
    $region8: #{tpu_custom_call.1} parent=1 // pred_region
      %27 = vsyncadd [#allocation6], 0
      %s28 = sshll.u32 %s1, 4
      %s29 = int_to_ptr.hbm [resolvable:$true] %s28
      %s30 = sshll.u32 [#allocation5], 4
      %s31 = int_to_ptr.vmem [resolvable:$true] %s30
      %36 = dma.hbm_to_vmem [thread:$0]  %s29, 2048, %s31, [#allocation6], 128, 128, 8
    $region9: #{tpu_custom_call.1} parent=1 // pred_fallthru
      _
    // Predicated region
    $region10: #{tpu_custom_call.1} parent=1 // pred_check
      _
    $region11: #{tpu_custom_call.1} parent=1 // pred_check_branch
      %38 = sbr.rel (0) target = $region13
    $region12: #{tpu_custom_call.1} parent=1 // pred_region
      %40 = vsyncadd [#allocation6], 0
      %s41 = sshll.u32 %s2, 4
      %s42 = int_to_ptr.hbm [resolvable:$true] %s41
      %s43 = sshll.u32 [#allocation7], 4
      %s44 = int_to_ptr.vmem [resolvable:$true] %s43
      %49 = dma.hbm_to_vmem [thread:$0]  %s42, 4096, %s44, [#allocation6], 128, 128, 8
    $region13: #{tpu_custom_call.1} parent=1 // pred_fallthru
      _
    // Predicated region
    $region14: #{tpu_custom_call.1} parent=1 // pred_check
      _
    $region15: #{tpu_custom_call.1} parent=1 // pred_check_branch
      %51 = sbr.rel (0) target = $region17
    $region16: #{tpu_custom_call.1} parent=1 // pred_region
      %53 = dma.done [#allocation3], 1024
    $region17: #{tpu_custom_call.1} parent=1 // pred_fallthru
      _
    // Predicated region
    $region18: #{tpu_custom_call.1} parent=1 // pred_check
      _
    $region19: #{tpu_custom_call.1} parent=1 // pred_check_branch
      %55 = sbr.rel (0) target = $region21
    $region20: #{tpu_custom_call.1} parent=1 // pred_region
      %57 = dma.done [#allocation6], 2048
    $region21: #{tpu_custom_call.1} parent=1 // pred_fallthru
      _
    // Predicated region
    $region22: #{tpu_custom_call.1} parent=1 // pred_check
      _
    $region23: #{tpu_custom_call.1} parent=1 // pred_check_branch
      %59 = sbr.rel (0) target = $region25
    $region24: #{tpu_custom_call.1} parent=1 // pred_region
      %61 = dma.done [#allocation6], 4096
    $region25: #{tpu_custom_call.1} parent=1 // pred_fallthru
      _
    %v62 = vld [vmem:[#allocation2] sm:$0xf]
    %v63 = vld [vmem:[#allocation2 + $0x4] sm:$0xf]
    %v64 = vld [vmem:[#allocation2 + $0x8] sm:$0xf]
    %v65 = vld [vmem:[#allocation2 + $0xc] sm:$0xf]
    %v66 = vld [vmem:[#allocation2 + $0x10] sm:$0xf]
    %v67 = vld [vmem:[#allocation2 + $0x14] sm:$0xf]
    %v68 = vld [vmem:[#allocation2 + $0x18] sm:$0xf]
    %v69 = vld [vmem:[#allocation2 + $0x1c] sm:$0xf]
    %v70 = vld [vmem:[#allocation2 + $0x20] sm:$0xf]
    %v71 = vld [vmem:[#allocation2 + $0x24] sm:$0xf]
    %v72 = vld [vmem:[#allocation2 + $0x28] sm:$0xf]
    %v73 = vld [vmem:[#allocation2 + $0x2c] sm:$0xf]
    %v74 = vld [vmem:[#allocation2 + $0x30] sm:$0xf]
    %v75 = vld [vmem:[#allocation2 + $0x34] sm:$0xf]
    %v76 = vld [vmem:[#allocation2 + $0x38] sm:$0xf]
    %v77 = vld [vmem:[#allocation2 + $0x3c] sm:$0xf]
    %v78 = vld [vmem:[#allocation5] sm:$0xff]
    %v79 = vld [vmem:[#allocation5 + $0x8] sm:$0xff]
    %v80 = vld [vmem:[#allocation5 + $0x10] sm:$0xff]
    %v81 = vld [vmem:[#allocation5 + $0x18] sm:$0xff]
    %v82 = vld [vmem:[#allocation5 + $0x20] sm:$0xff]
    %v83 = vld [vmem:[#allocation5 + $0x28] sm:$0xff]
    %v84 = vld [vmem:[#allocation5 + $0x30] sm:$0xff]
    %v85 = vld [vmem:[#allocation5 + $0x38] sm:$0xff]
    %v86 = vld [vmem:[#allocation5 + $0x40] sm:$0xff]
    %v87 = vld [vmem:[#allocation5 + $0x48] sm:$0xff]
    %v88 = vld [vmem:[#allocation5 + $0x50] sm:$0xff]
    %v89 = vld [vmem:[#allocation5 + $0x58] sm:$0xff]
    %v90 = vld [vmem:[#allocation5 + $0x60] sm:$0xff]
    %v91 = vld [vmem:[#allocation5 + $0x68] sm:$0xff]
    %v92 = vld [vmem:[#allocation5 + $0x70] sm:$0xff]
    %v93 = vld [vmem:[#allocation5 + $0x78] sm:$0xff]
    %v94 = vpack.c.bf16 %v79, %v78
    %v95 = vpack.c.bf16 %v81, %v80
    %v96 = vpack.c.bf16 %v83, %v82
    %v97 = vpack.c.bf16 %v85, %v84
    %v98 = vpack.c.bf16 %v87, %v86
    %v99 = vpack.c.bf16 %v89, %v88
    %v100 = vpack.c.bf16 %v91, %v90
    %v101 = vpack.c.bf16 %v93, %v92
    %v118 = vunpack.c.l.b16 %v62
    %v119 = vunpack.c.l.b16 %v63
    %v120 = vunpack.c.l.b16 %v64
    %v121 = vunpack.c.l.b16 %v65
    %v122 = vunpack.c.l.b16 %v66
    %v123 = vunpack.c.l.b16 %v67
    %v124 = vunpack.c.l.b16 %v68
    %v125 = vunpack.c.l.b16 %v69
    %v126 = vunpack.c.l.b16 %v70
    %v127 = vunpack.c.l.b16 %v71
    %v128 = vunpack.c.l.b16 %v72
    %v129 = vunpack.c.l.b16 %v73
    %v130 = vunpack.c.l.b16 %v74
    %v131 = vunpack.c.l.b16 %v75
    %v132 = vunpack.c.l.b16 %v76
    %v133 = vunpack.c.l.b16 %v77
    %v134 = vpack.c.b16 %v119, %v118
    %v135 = vpack.c.b16 %v121, %v120
    %v136 = vpack.c.b16 %v123, %v122
    %v137 = vpack.c.b16 %v125, %v124
    %v138 = vpack.c.b16 %v127, %v126
    %v139 = vpack.c.b16 %v129, %v128
    %v140 = vpack.c.b16 %v131, %v130
    %v141 = vpack.c.b16 %v133, %v132
    %150 = vmatpush.bf16.msra.mxu0 %v101
    %151 = vmatpush.bf16.msra.mxu0 %v100
    %152 = vmatpush.bf16.msra.mxu0 %v99
    %153 = vmatpush.bf16.msra.mxu0 %v98
    %154 = vmatpush.bf16.msra.mxu0 %v97
    %155 = vmatpush.bf16.msra.mxu0 %v96
    %156 = vmatpush.bf16.msra.mxu0 %v95
    %157 = vmatpush.bf16.msra.mxu0 %v94
    %158 = vmatmul.bf16.gmra.mxu0 %v134
    %v159 = vpop.f32.mrf.mxu0
    %v160 = vadd.f32 %v78, %v159
    %v161 = vpop.f32.mrf.mxu0
    %v162 = vadd.f32 %v79, %v161
    %163 = vmatmul.bf16.gmra.mxu0 %v135
    %v164 = vpop.f32.mrf.mxu0
    %v165 = vadd.f32 %v80, %v164
    %v166 = vpop.f32.mrf.mxu0
    %v167 = vadd.f32 %v81, %v166
    %168 = vmatmul.bf16.gmra.mxu0 %v136
    %v169 = vpop.f32.mrf.mxu0
    %v170 = vadd.f32 %v82, %v169
    %v171 = vpop.f32.mrf.mxu0
    %v172 = vadd.f32 %v83, %v171
    %173 = vmatmul.bf16.gmra.mxu0 %v137
    %v174 = vpop.f32.mrf.mxu0
    %v175 = vadd.f32 %v84, %v174
    %v176 = vpop.f32.mrf.mxu0
    %v177 = vadd.f32 %v85, %v176
    %178 = vmatmul.bf16.gmra.mxu0 %v138
    %v179 = vpop.f32.mrf.mxu0
    %v180 = vadd.f32 %v86, %v179
    %v181 = vpop.f32.mrf.mxu0
    %v182 = vadd.f32 %v87, %v181
    %183 = vmatmul.bf16.gmra.mxu0 %v139
    %v184 = vpop.f32.mrf.mxu0
    %v185 = vadd.f32 %v88, %v184
    %v186 = vpop.f32.mrf.mxu0
    %v187 = vadd.f32 %v89, %v186
    %188 = vmatmul.bf16.gmra.mxu0 %v140
    %v189 = vpop.f32.mrf.mxu0
    %v190 = vadd.f32 %v90, %v189
    %v191 = vpop.f32.mrf.mxu0
    %v192 = vadd.f32 %v91, %v191
    %193 = vmatmul.bf16.gmra.mxu0 %v141
    %v194 = vpop.f32.mrf.mxu0
    %v195 = vadd.f32 %v92, %v194
    %v196 = vpop.f32.mrf.mxu0
    %v197 = vadd.f32 %v93, %v196
    %198 = vdwg.mxu0
    %v199 = vld [vmem:[#allocation7] sm:$0xff]
    %v200 = vld [vmem:[#allocation7 + $0x8] sm:$0xff]
    %v201 = vld [vmem:[#allocation7 + $0x10] sm:$0xff]
    %v202 = vld [vmem:[#allocation7 + $0x18] sm:$0xff]
    %v203 = vld [vmem:[#allocation7 + $0x20] sm:$0xff]
    %v204 = vld [vmem:[#allocation7 + $0x28] sm:$0xff]
    %v205 = vld [vmem:[#allocation7 + $0x30] sm:$0xff]
    %v206 = vld [vmem:[#allocation7 + $0x38] sm:$0xff]
    %v207 = vld [vmem:[#allocation7 + $0x40] sm:$0xff]
    %v208 = vld [vmem:[#allocation7 + $0x48] sm:$0xff]
    %v209 = vld [vmem:[#allocation7 + $0x50] sm:$0xff]
    %v210 = vld [vmem:[#allocation7 + $0x58] sm:$0xff]
    %v211 = vld [vmem:[#allocation7 + $0x60] sm:$0xff]
    %v212 = vld [vmem:[#allocation7 + $0x68] sm:$0xff]
    %v213 = vld [vmem:[#allocation7 + $0x70] sm:$0xff]
    %v214 = vld [vmem:[#allocation7 + $0x78] sm:$0xff]
    %v215 = vmul.f32 %v160, %v199
    %v216 = vmul.f32 %v162, %v200
    %v217 = vmul.f32 %v165, %v201
    %v218 = vmul.f32 %v167, %v202
    %v219 = vmul.f32 %v170, %v203
    %v220 = vmul.f32 %v172, %v204
    %v221 = vmul.f32 %v175, %v205
    %v222 = vmul.f32 %v177, %v206
    %v223 = vmul.f32 %v180, %v207
    %v224 = vmul.f32 %v182, %v208
    %v225 = vmul.f32 %v185, %v209
    %v226 = vmul.f32 %v187, %v210
    %v227 = vmul.f32 %v190, %v211
    %v228 = vmul.f32 %v192, %v212
    %v229 = vmul.f32 %v195, %v213
    %v230 = vmul.f32 %v197, %v214
    %v231 = vadd.f32 %v78, %v215
    %v232 = vadd.f32 %v79, %v216
    %v233 = vadd.f32 %v80, %v217
    %v234 = vadd.f32 %v81, %v218
    %v235 = vadd.f32 %v82, %v219
    %v236 = vadd.f32 %v83, %v220
    %v237 = vadd.f32 %v84, %v221
    %v238 = vadd.f32 %v85, %v222
    %v239 = vadd.f32 %v86, %v223
    %v240 = vadd.f32 %v87, %v224
    %v241 = vadd.f32 %v88, %v225
    %v242 = vadd.f32 %v89, %v226
    %v243 = vadd.f32 %v90, %v227
    %v244 = vadd.f32 %v91, %v228
    %v245 = vadd.f32 %v92, %v229
    %v246 = vadd.f32 %v93, %v230
    %v247 = vpack.c.bf16 %v216, %v215
    %v248 = vpack.c.bf16 %v218, %v217
    %v249 = vpack.c.bf16 %v220, %v219
    %v250 = vpack.c.bf16 %v222, %v221
    %v251 = vpack.c.bf16 %v224, %v223
    %v252 = vpack.c.bf16 %v226, %v225
    %v253 = vpack.c.bf16 %v228, %v227
    %v254 = vpack.c.bf16 %v230, %v229
    %255 = vmatpush.bf16.msra.mxu0 %v254
    %256 = vmatpush.bf16.msra.mxu0 %v253
    %257 = vmatpush.bf16.msra.mxu0 %v252
    %258 = vmatpush.bf16.msra.mxu0 %v251
    %259 = vmatpush.bf16.msra.mxu0 %v250
    %260 = vmatpush.bf16.msra.mxu0 %v249
    %261 = vmatpush.bf16.msra.mxu0 %v248
    %262 = vmatpush.bf16.msra.mxu0 %v247
    %263 = vmatmul.bf16.gmra.mxu0 %v134
    %v264 = vpop.f32.mrf.mxu0
    %v265 = vadd.f32 %v215, %v264
    %v266 = vpop.f32.mrf.mxu0
    %v267 = vadd.f32 %v216, %v266
    %268 = vmatmul.bf16.gmra.mxu0 %v135
    %v269 = vpop.f32.mrf.mxu0
    %v270 = vadd.f32 %v217, %v269
    %v271 = vpop.f32.mrf.mxu0
    %v272 = vadd.f32 %v218, %v271
    %273 = vmatmul.bf16.gmra.mxu0 %v136
    %v274 = vpop.f32.mrf.mxu0
    %v275 = vadd.f32 %v219, %v274
    %v276 = vpop.f32.mrf.mxu0
    %v277 = vadd.f32 %v220, %v276
    %278 = vmatmul.bf16.gmra.mxu0 %v137
    %v279 = vpop.f32.mrf.mxu0
    %v280 = vadd.f32 %v221, %v279
    %v281 = vpop.f32.mrf.mxu0
    %v282 = vadd.f32 %v222, %v281
    %283 = vmatmul.bf16.gmra.mxu0 %v138
    %v284 = vpop.f32.mrf.mxu0
    %v285 = vadd.f32 %v223, %v284
    %v286 = vpop.f32.mrf.mxu0
    %v287 = vadd.f32 %v224, %v286
    %288 = vmatmul.bf16.gmra.mxu0 %v139
    %v289 = vpop.f32.mrf.mxu0
    %v290 = vadd.f32 %v225, %v289
    %v291 = vpop.f32.mrf.mxu0
    %v292 = vadd.f32 %v226, %v291
    %293 = vmatmul.bf16.gmra.mxu0 %v140
    %v294 = vpop.f32.mrf.mxu0
    %v295 = vadd.f32 %v227, %v294
    %v296 = vpop.f32.mrf.mxu0
    %v297 = vadd.f32 %v228, %v296
    %298 = vmatmul.bf16.gmra.mxu0 %v141
    %v299 = vpop.f32.mrf.mxu0
    %v300 = vadd.f32 %v229, %v299
    %v301 = vpop.f32.mrf.mxu0
    %v302 = vadd.f32 %v230, %v301
    %303 = vdwg.mxu0
    %s304 = scalar_lea.vmem [#allocation7], 128
    %v305 = vld [vmem:[%s304] sm:$0xff]
    %v306 = vld [vmem:[%s304 + $0x8] sm:$0xff]
    %v307 = vld [vmem:[%s304 + $0x10] sm:$0xff]
    %v308 = vld [vmem:[%s304 + $0x18] sm:$0xff]
    %v309 = vld [vmem:[%s304 + $0x20] sm:$0xff]
    %v310 = vld [vmem:[%s304 + $0x28] sm:$0xff]
    %v311 = vld [vmem:[%s304 + $0x30] sm:$0xff]
    %v312 = vld [vmem:[%s304 + $0x38] sm:$0xff]
    %v313 = vld [vmem:[%s304 + $0x40] sm:$0xff]
    %v314 = vld [vmem:[%s304 + $0x48] sm:$0xff]
    %v315 = vld [vmem:[%s304 + $0x50] sm:$0xff]
    %v316 = vld [vmem:[%s304 + $0x58] sm:$0xff]
    %v317 = vld [vmem:[%s304 + $0x60] sm:$0xff]
    %v318 = vld [vmem:[%s304 + $0x68] sm:$0xff]
    %v319 = vld [vmem:[%s304 + $0x70] sm:$0xff]
    %v320 = vld [vmem:[%s304 + $0x78] sm:$0xff]
    %v321 = vmul.f32 %v265, %v305
    %v322 = vmul.f32 %v267, %v306
    %v323 = vmul.f32 %v270, %v307
    %v324 = vmul.f32 %v272, %v308
    %v325 = vmul.f32 %v275, %v309
    %v326 = vmul.f32 %v277, %v310
    %v327 = vmul.f32 %v280, %v311
    %v328 = vmul.f32 %v282, %v312
    %v329 = vmul.f32 %v285, %v313
    %v330 = vmul.f32 %v287, %v314
    %v331 = vmul.f32 %v290, %v315
    %v332 = vmul.f32 %v292, %v316
    %v333 = vmul.f32 %v295, %v317
    %v334 = vmul.f32 %v297, %v318
    %v335 = vmul.f32 %v300, %v319
    %v336 = vmul.f32 %v302, %v320
    %v337 = vadd.f32 %v231, %v321
    %v338 = vadd.f32 %v232, %v322
    %v339 = vadd.f32 %v233, %v323
    %v340 = vadd.f32 %v234, %v324
    %v341 = vadd.f32 %v235, %v325
    %v342 = vadd.f32 %v236, %v326
    %v343 = vadd.f32 %v237, %v327
    %v344 = vadd.f32 %v238, %v328
    %v345 = vadd.f32 %v239, %v329
    %v346 = vadd.f32 %v240, %v330
    %v347 = vadd.f32 %v241, %v331
    %v348 = vadd.f32 %v242, %v332
    %v349 = vadd.f32 %v243, %v333
    %v350 = vadd.f32 %v244, %v334
    %v351 = vadd.f32 %v245, %v335
    %v352 = vadd.f32 %v246, %v336
    %v353 = vmul.f32 %v337, 0.33333334
    %v354 = vmul.f32 %v338, 0.33333334
    %v355 = vmul.f32 %v339, 0.33333334
    %v356 = vmul.f32 %v340, 0.33333334
    %v357 = vmul.f32 %v341, 0.33333334
    %v358 = vmul.f32 %v342, 0.33333334
    %v359 = vmul.f32 %v343, 0.33333334
    %v360 = vmul.f32 %v344, 0.33333334
    %v361 = vmul.f32 %v345, 0.33333334
    %v362 = vmul.f32 %v346, 0.33333334
    %v363 = vmul.f32 %v347, 0.33333334
    %v364 = vmul.f32 %v348, 0.33333334
    %v365 = vmul.f32 %v349, 0.33333334
    %v366 = vmul.f32 %v350, 0.33333334
    %v367 = vmul.f32 %v351, 0.33333334
    %v368 = vmul.f32 %v352, 0.33333334
    %369 = vst [vmem:[#allocation8] sm:$0xff] %v353
    %370 = vst [vmem:[#allocation8 + $0x8] sm:$0xff] %v354
    %371 = vst [vmem:[#allocation8 + $0x10] sm:$0xff] %v355
    %372 = vst [vmem:[#allocation8 + $0x18] sm:$0xff] %v356
    %373 = vst [vmem:[#allocation8 + $0x20] sm:$0xff] %v357
    %374 = vst [vmem:[#allocation8 + $0x28] sm:$0xff] %v358
    %375 = vst [vmem:[#allocation8 + $0x30] sm:$0xff] %v359
    %376 = vst [vmem:[#allocation8 + $0x38] sm:$0xff] %v360
    %377 = vst [vmem:[#allocation8 + $0x40] sm:$0xff] %v361
    %378 = vst [vmem:[#allocation8 + $0x48] sm:$0xff] %v362
    %379 = vst [vmem:[#allocation8 + $0x50] sm:$0xff] %v363
    %380 = vst [vmem:[#allocation8 + $0x58] sm:$0xff] %v364
    %381 = vst [vmem:[#allocation8 + $0x60] sm:$0xff] %v365
    %382 = vst [vmem:[#allocation8 + $0x68] sm:$0xff] %v366
    %383 = vst [vmem:[#allocation8 + $0x70] sm:$0xff] %v367
    %384 = vst [vmem:[#allocation8 + $0x78] sm:$0xff] %v368
    // Predicated region
    $region26: #{tpu_custom_call.1} parent=1 // pred_check
      _
    $region27: #{tpu_custom_call.1} parent=1 // pred_check_branch
      %386 = sbr.rel (0) target = $region29
    $region28: #{tpu_custom_call.1} parent=1 // pred_region
      %388 = vsyncadd [#allocation4], 0
      %s389 = sshll.u32 [#allocation8], 4
      %s390 = int_to_ptr.vmem [resolvable:$true] %s389
      %s391 = sshll.u32 %s3, 4
      %s392 = int_to_ptr.hbm [resolvable:$true] %s391
      %397 = dma.vmem_to_hbm [thread:$0]  %s390, 2048, %s392, [#allocation4], 128, 128, 8
    $region29: #{tpu_custom_call.1} parent=1 // pred_fallthru
      _
    // Predicated region
    $region30: #{tpu_custom_call.1} parent=1 // pred_check
      _
    $region31: #{tpu_custom_call.1} parent=1 // pred_check_branch
      %399 = sbr.rel (0) target = $region33
    $region32: #{tpu_custom_call.1} parent=1 // pred_region
      %401 = dma.done [#allocation4], 2048
    $region33: #{tpu_custom_call.1} parent=1 // pred_fallthru
      _
    %402 = vsyncpa [#allocation3], 1
    %403 = vsyncpa [#allocation6], 1
    %404 = vsyncpa [#allocation4], 1

</llo_original>
